<compile_context>
chip_gen: v7x
topology: tpu7x:2x2x1
jax: 0.10.0
libtpu: 0.0.40
codegen_flags: <defaults>
</compile_context>

<pallas_src>
import jax
import jax.numpy as jnp
from jax.experimental import pallas as pl
from jax.experimental.pallas import tpu as pltpu


# --------------------------------------------------------------------------
# Helpers
# --------------------------------------------------------------------------
def _round_up(v, m):
    return (v + m - 1) // m * m


def _pick_tn(Op):
    # Prefer 256-wide output tiles only when there would still be >=2 j-blocks
    # (keeps the O axis splittable across v7x's two TensorCores); never go
    # below 128 so stores stay lane-dense.
    if Op % 256 == 0 and Op >= 512:
        return 256
    return 128 if Op % 128 == 0 else Op


def _pick_tm(Bp, cap=512):
    # Largest batch tile (multiple of the sublane quantum, already baked into
    # Bp) up to `cap`; every extra i-block re-streams BOTH weight matrices.
    if Bp <= cap:
        return Bp, Bp
    return cap, _round_up(Bp, cap)


def _pick_tk(Dp, tm, tn, isz, out_isz, budget_bytes=10 << 20):
    # Largest K tile (ideally all of D -> single K step) that keeps the
    # double-buffered working set inside a conservative VMEM budget.
    for tk in (Dp, 2048, 1024, 512, 256, 128):
        if tk > Dp or Dp % tk != 0:
            continue
        multi_k = tk != Dp
        vmem = (2 * (2 * tm * tk + 2 * tk * tn) * isz   # dbl-buffered x,y,Wx,Wy
                + 2 * tn * 4                            # dbl-buffered bias (f32)
                + 2 * tm * tn * out_isz                 # dbl-buffered output
                + (tm * tn * 4 if multi_k else 0))      # f32 accumulator
        if vmem <= budget_bytes:
            return tk
    return 128


# --------------------------------------------------------------------------
# Kernels
# --------------------------------------------------------------------------
def _sum_fusion_kernel_single_k(x_ref, y_ref, wx_ref, wy_ref, b_ref, o_ref):
    # Whole reduction in one step: no scratch accumulator, no init/epilogue.
    acc = jnp.dot(x_ref[...], wx_ref[...], preferred_element_type=jnp.float32)
    acc = acc + jnp.dot(y_ref[...], wy_ref[...],
                        preferred_element_type=jnp.float32)
    o_ref[...] = (acc + b_ref[...].astype(jnp.float32)).astype(o_ref.dtype)


def _sum_fusion_kernel_multi_k(x_ref, y_ref, wx_ref, wy_ref, b_ref, o_ref,
                               acc_ref):
    k = pl.program_id(2)

    @pl.when(k == 0)
    def _():
        # Fold the bias into the accumulator init (replaces zero-fill + a
        # full tm x tn epilogue add).
        acc_ref[...] = jnp.broadcast_to(
            b_ref[...].astype(jnp.float32), acc_ref.shape)

    acc_ref[...] += (
        jnp.dot(x_ref[...], wx_ref[...], preferred_element_type=jnp.float32)
        + jnp.dot(y_ref[...], wy_ref[...], preferred_element_type=jnp.float32))

    @pl.when(k == pl.num_programs(2) - 1)
    def _():
        o_ref[...] = acc_ref[...].astype(o_ref.dtype)


# --------------------------------------------------------------------------
# One-time (init-time) parameter preparation -- NOT per call.
# --------------------------------------------------------------------------
def prepare_sum_fusion_params(wx, bx, wy, by, param_dtype=None):
    """Transpose nn.Linear weights to (D, O), fold biases, pad to lane-aligned
    shapes, optionally cast to bf16.  Done once; sum_fusion() reuses it."""
    O, D = wx.shape
    dtype = jnp.dtype(param_dtype) if param_dtype is not None else wx.dtype
    Dp, Op = _round_up(D, 128), _round_up(O, 128)
    wx_t = jnp.pad(wx.T.astype(dtype), ((0, Dp - D), (0, Op - O)))
    wy_t = jnp.pad(wy.T.astype(dtype), ((0, Dp - D), (0, Op - O)))
    # Bias stays f32 so folding it into the f32 accumulator is exact.
    bias = jnp.pad((bx + by).astype(jnp.float32), (0, Op - O)).reshape(1, Op)
    return {"wx_t": wx_t, "wy_t": wy_t, "bias": bias,
            "in_dim": D, "out_dim": O, "dtype": jnp.dtype(dtype)}


# --------------------------------------------------------------------------
# Forward
# --------------------------------------------------------------------------
def sum_fusion(x, y, params):
    """SumFusion forward: returns (x, y, x @ Wx^T + y @ Wy^T + bx + by)."""
    D, O = params["in_dim"], params["out_dim"]
    wx_t, wy_t, bias = params["wx_t"], params["wy_t"], params["bias"]
    cdtype = params["dtype"]
    out_dtype = x.dtype

    B = x.shape[0]
    assert x.shape == (B, D) and y.shape == (B, D)
    Dp, Op = wx_t.shape

    isz = cdtype.itemsize
    out_isz = jnp.dtype(out_dtype).itemsize
    sub = 8 if isz == 4 else 16          # sublane quantum (bf16 packs 16 rows)
    Bp = _round_up(B, sub)

    tn = _pick_tn(Op)
    tm, Bp = _pick_tm(Bp)
    tk = _pick_tk(Dp, tm, tn, isz, out_isz)

    # Activation cast / pad only when actually needed (common case: no-op).
    xc = x.astype(cdtype) if x.dtype != cdtype else x
    yc = y.astype(cdtype) if y.dtype != cdtype else y
    if Bp != B or Dp != D:
        xc = jnp.pad(xc, ((0, Bp - B), (0, Dp - D)))
        yc = jnp.pad(yc, ((0, Bp - B), (0, Dp - D)))

    flops = 2 * 2 * B * D * O
    bytes_accessed = (2 * B * D * isz + 2 * Dp * Op * isz + Op * 4
                      + B * O * out_isz)
    cost = pl.CostEstimate(flops=flops, transcendentals=0,
                           bytes_accessed=bytes_accessed)

    if tk == Dp:
        # Single reduction step: scratch-free kernel, 2-D grid.
        grid = (Bp // tm, Op // tn)
        out_padded = pl.pallas_call(
            _sum_fusion_kernel_single_k,
            out_shape=jax.ShapeDtypeStruct((Bp, Op), out_dtype),
            grid_spec=pltpu.PrefetchScalarGridSpec(
                num_scalar_prefetch=0,
                grid=grid,
                in_specs=[
                    pl.BlockSpec((tm, tk), lambda i, j: (i, 0)),   # x
                    pl.BlockSpec((tm, tk), lambda i, j: (i, 0)),   # y
                    pl.BlockSpec((tk, tn), lambda i, j: (0, j)),   # Wx^T
                    pl.BlockSpec((tk, tn), lambda i, j: (0, j)),   # Wy^T
                    pl.BlockSpec((1, tn), lambda i, j: (0, j)),    # bias
                ],
                out_specs=pl.BlockSpec((tm, tn), lambda i, j: (i, j)),
            ),
            compiler_params=pltpu.CompilerParams(
                dimension_semantics=("parallel", "parallel")),
            cost_estimate=cost,
        )(xc, yc, wx_t, wy_t, bias)
    else:
        # Multi-step reduction: K axis innermost, f32 accumulator in VMEM.
        grid = (Bp // tm, Op // tn, Dp // tk)
        out_padded = pl.pallas_call(
            _sum_fusion_kernel_multi_k,
            out_shape=jax.ShapeDtypeStruct((Bp, Op), out_dtype),
            grid_spec=pltpu.PrefetchScalarGridSpec(
                num_scalar_prefetch=0,
                grid=grid,
                in_specs=[
                    pl.BlockSpec((tm, tk), lambda i, j, k: (i, k)),   # x
                    pl.BlockSpec((tm, tk), lambda i, j, k: (i, k)),   # y
                    pl.BlockSpec((tk, tn), lambda i, j, k: (k, j)),   # Wx^T
                    pl.BlockSpec((tk, tn), lambda i, j, k: (k, j)),   # Wy^T
                    pl.BlockSpec((1, tn), lambda i, j, k: (0, j)),    # bias
                ],
                out_specs=pl.BlockSpec((tm, tn), lambda i, j, k: (i, j)),
                scratch_shapes=[pltpu.VMEM((tm, tn), jnp.float32)],
            ),
            compiler_params=pltpu.CompilerParams(
                dimension_semantics=("parallel", "parallel", "arbitrary")),
            cost_estimate=cost,
        )(xc, yc, wx_t, wy_t, bias)

    out = out_padded
    if Bp != B or Op != O:
        out = out_padded[:B, :O]
    return x, y, out


# --------------------------------------------------------------------------
# Demo / self-check
# --------------------------------------------------------------------------
def _init_linear(key, out_dim, in_dim, dtype=jnp.float32):
    # Mimics nn.Linear's uniform(-k, k), k = 1/sqrt(in_dim); PyTorch (O, D).
    kw, kb = jax.random.split(key)
    bound = 1.0 / jnp.sqrt(jnp.float32(in_dim))
    w = jax.random.uniform(kw, (out_dim, in_dim), dtype, -bound, bound)
    b = jax.random.uniform(kb, (out_dim,), dtype, -bound, bound)
    return w, b


if __name__ == "__main__":
    # Module defaults: input_dim=512, output_dim=100; small batch.
    B, D, O = 8, 512, 100

    key = jax.random.PRNGKey(0)
    kx, ky, kwx, kwy = jax.random.split(key, 4)

    x = jax.random.normal(kx, (B, D), jnp.float32)
    y = jax.random.normal(ky, (B, D), jnp.float32)

    wx, bx = _init_linear(kwx, O, D)   # (O, D) PyTorch layout
    wy, by = _init_linear(kwy, O, D)

    ref = (x @ wx.T + bx) + (y @ wy.T + by)

    # --- f32 path (matches nn.Linear default dtype; strict tolerance) ------
    params_f32 = prepare_sum_fusion_params(wx, bx, wy, by)
    rx, ry, out = jax.block_until_ready(sum_fusion(x, y, params_f32))
    assert rx.shape == x.shape and ry.shape == y.shape
    assert jnp.allclose(rx, x) and jnp.allclose(ry, y)
    assert jnp.allclose(out, ref, atol=1e-4, rtol=1e-4)

    # --- bf16 weights/activations, f32 accumulation (halved HBM traffic) ---
    params_bf16 = prepare_sum_fusion_params(wx, bx, wy, by,
                                            param_dtype=jnp.bfloat16)
    _, _, out_bf16 = jax.block_until_ready(sum_fusion(x, y, params_bf16))
    assert jnp.allclose(out_bf16, ref, atol=5e-2, rtol=5e-2)

    print("KERNEL_OK")
</pallas_src>

<mosaic_0001>
module attributes {stable_mosaic.version = 11 : i64} {
  func.func @_sum_fusion_kernel_single_k(%arg0: i32, %arg1: i32, %arg2: memref<8x512xf32, #tpu.memory_space<vmem>>, %arg3: memref<8x512xf32, #tpu.memory_space<vmem>>, %arg4: memref<512x128xf32, #tpu.memory_space<vmem>>, %arg5: memref<512x128xf32, #tpu.memory_space<vmem>>, %arg6: memref<1x128xf32, #tpu.memory_space<vmem>>, %arg7: memref<8x128xf32, #tpu.memory_space<vmem>>) attributes {dimension_semantics = [#tpu.dimension_semantics<parallel>, #tpu.dimension_semantics<parallel>], iteration_bounds = array<i64: 1, 1>, scalar_prefetch = 0 : i64, scratch_operands = 0 : i64, tpu.core_type = #tpu.core_type<tc>, window_params = [{transform_indices = @transform_0, window_bounds = array<i64: 8, 512>}, {transform_indices = @transform_1, window_bounds = array<i64: 8, 512>}, {transform_indices = @transform_2, window_bounds = array<i64: 512, 128>}, {transform_indices = @transform_3, window_bounds = array<i64: 512, 128>}, {transform_indices = @transform_4, window_bounds = array<i64: 1, 128>}, {transform_indices = @transform_5, window_bounds = array<i64: 8, 128>}]} {
    %c0 = arith.constant 0 : index
    %c0_0 = arith.constant 0 : index
    %0 = vector.load %arg2[%c0, %c0_0] : memref<8x512xf32, #tpu.memory_space<vmem>>, vector<8x512xf32>
    %c0_1 = arith.constant 0 : index
    %c0_2 = arith.constant 0 : index
    %1 = vector.load %arg4[%c0_1, %c0_2] : memref<512x128xf32, #tpu.memory_space<vmem>>, vector<512x128xf32>
    %cst = arith.constant dense<0.000000e+00> : vector<8x128xf32>
    %2 = tpu.matmul %0, %1, %cst {dimension_numbers = #tpu.dot_dimension_numbers<[1], [0], [0], [1], [0, 0, 1, 1], [], []>} : vector<8x512xf32>, vector<512x128xf32>, vector<8x128xf32> -> vector<8x128xf32>
    %c0_3 = arith.constant 0 : index
    %c0_4 = arith.constant 0 : index
    %3 = vector.load %arg3[%c0_3, %c0_4] : memref<8x512xf32, #tpu.memory_space<vmem>>, vector<8x512xf32>
    %c0_5 = arith.constant 0 : index
    %c0_6 = arith.constant 0 : index
    %4 = vector.load %arg5[%c0_5, %c0_6] : memref<512x128xf32, #tpu.memory_space<vmem>>, vector<512x128xf32>
    %cst_7 = arith.constant dense<0.000000e+00> : vector<8x128xf32>
    %5 = tpu.matmul %3, %4, %cst_7 {dimension_numbers = #tpu.dot_dimension_numbers<[1], [0], [0], [1], [0, 0, 1, 1], [], []>} : vector<8x512xf32>, vector<512x128xf32>, vector<8x128xf32> -> vector<8x128xf32>
    %6 = arith.addf %2, %5 : vector<8x128xf32>
    %c0_8 = arith.constant 0 : index
    %c0_9 = arith.constant 0 : index
    %7 = vector.load %arg6[%c0_8, %c0_9] : memref<1x128xf32, #tpu.memory_space<vmem>>, vector<1x128xf32>
    %8 = vector.broadcast %7 : vector<1x128xf32> to vector<8x128xf32>
    %9 = arith.addf %6, %8 : vector<8x128xf32>
    %c0_10 = arith.constant 0 : index
    %c0_11 = arith.constant 0 : index
    %10 = vector.load %arg7[%c0_10, %c0_11] : memref<8x128xf32, #tpu.memory_space<vmem>>, vector<8x128xf32>
    tpu.vector_store %arg7[%c0_10, %c0_11], %9 {strides = array<i32>} : memref<8x128xf32, #tpu.memory_space<vmem>>, vector<8x128xf32>,
    return
  }
  func.func @transform_0(%arg0: i32, %arg1: i32) -> (i32, i32) {
    %c0_i32 = arith.constant 0 : i32
    %c0_i32_0 = arith.constant 0 : i32
    return %arg0, %c0_i32 : i32, i32
  }
  func.func @transform_1(%arg0: i32, %arg1: i32) -> (i32, i32) {
    %c0_i32 = arith.constant 0 : i32
    %c0_i32_0 = arith.constant 0 : i32
    return %arg0, %c0_i32 : i32, i32
  }
  func.func @transform_2(%arg0: i32, %arg1: i32) -> (i32, i32) {
    %c0_i32 = arith.constant 0 : i32
    %c0_i32_0 = arith.constant 0 : i32
    return %c0_i32, %arg1 : i32, i32
  }
  func.func @transform_3(%arg0: i32, %arg1: i32) -> (i32, i32) {
    %c0_i32 = arith.constant 0 : i32
    %c0_i32_0 = arith.constant 0 : i32
    return %c0_i32, %arg1 : i32, i32
  }
  func.func @transform_4(%arg0: i32, %arg1: i32) -> (i32, i32) {
    %c0_i32 = arith.constant 0 : i32
    %c0_i32_0 = arith.constant 0 : i32
    return %c0_i32, %arg1 : i32, i32
  }
  func.func @transform_5(%arg0: i32, %arg1: i32) -> (i32, i32) {
    %c0_i32 = arith.constant 0 : i32
    return %arg0, %arg1 : i32, i32
  }
}

</mosaic_0001>

<llo_original>
// kernel: tpu_custom_call.1
$region0: #{tpu_custom_call.1}
  #allocation0 [shape = 'u32[]', space=smem, size = 0x4, offset = 0x4, fixed_abs, tag = 'smem constant byte address 0x4 - core index']
  #allocation1 [shape = 'u32[144,128]{1,0:T(1,128)}', space=vmem, size = 0x12000, scoped, tag = 'internal scratch']
  %s0 = inlined_call_operand.hbm [shape: f32[8,512], index: 0, kind: input, shape index: {}]
  %s1 = inlined_call_operand.hbm [shape: f32[8,512], index: 1, kind: input, shape index: {}]
  %s2 = inlined_call_operand.hbm [shape: f32[512,128], index: 2, kind: input, shape index: {}]
  %s3 = inlined_call_operand.hbm [shape: f32[512,128], index: 3, kind: input, shape index: {}]
  %s4 = inlined_call_operand.vmem [shape: f32[1,128], index: 4, kind: input, shape index: {}]
  %s5 = inlined_call_operand.hbm [shape: f32[8,128], index: 5, kind: output, shape index: {}]
  %s6 = sld [smem:[#allocation0]]
  $region46: #{tpu_custom_call.1} parent=0
    _
  %s8 = ssub.s32 1, %s6
  %s9 = scalar_select 0, %s8, %s6
  $region1: #{tpu_custom_call.1} parent=0
    #allocation2 [shape = 'u8[16384]{0}', space=vmem, size = 0x4000, scoped, tag = 'input window, operand 0, single buffered']
    #allocation3 [shape = 's32[1]{0}', space=sflag, size = 0x4, scoped, tag = 'scoped memory for tpu_custom_call.1']
    #allocation4 [shape = 's32[1]{0}', space=sflag, size = 0x4, scoped, tag = 'scoped memory for tpu_custom_call.1']
    #allocation5 [shape = 'u8[16384]{0}', space=vmem, size = 0x4000, scoped, tag = 'input window, operand 1, single buffered']
    #allocation6 [shape = 's32[1]{0}', space=sflag, size = 0x4, scoped, tag = 'scoped memory for tpu_custom_call.1']
    #allocation7 [shape = 'u8[262144]{0}', space=vmem, size = 0x40000, scoped, tag = 'input window, operand 2, single buffered']
    #allocation8 [shape = 'u8[262144]{0}', space=vmem, size = 0x40000, scoped, tag = 'input window, operand 3, single buffered']
    #allocation9 [shape = 's32[1]{0}', space=sflag, size = 0x4, scoped, tag = 'scoped memory for tpu_custom_call.1']
    #allocation10 [shape = 'u8[4096]{0}', space=vmem, size = 0x1000, scoped, tag = 'output window, operand 0, single buffered']
    %10 = vsyncpa [#allocation3], 0
    %11 = vsyncpa [#allocation6], 0
    %12 = vsyncpa [#allocation9], 0
    %13 = vsyncpa [#allocation4], 0
    // Predicated region
    $region2: #{tpu_custom_call.1} parent=1 // pred_check
      _
    $region3: #{tpu_custom_call.1} parent=1 // pred_check_branch
      %15 = sbr.rel (0) target = $region5
    $region4: #{tpu_custom_call.1} parent=1 // pred_region
      %s17 = ssub.s32 512, 512
      %18 = vsyncadd [#allocation3], %s17
      %s20 = sshll.u32 [#allocation2], 4
      %s21 = int_to_ptr.vmem [resolvable:$true] %s20
      %23 = dma.hbm_to_vmem [thread:$0]  %s0, 512, %s21, [#allocation3]
    $region5: #{tpu_custom_call.1} parent=1 // pred_fallthru
      _
    // Predicated region
    $region6: #{tpu_custom_call.1} parent=1 // pred_check
      _
    $region7: #{tpu_custom_call.1} parent=1 // pred_check_branch
      %25 = sbr.rel (0) target = $region9
    $region8: #{tpu_custom_call.1} parent=1 // pred_region
      %s27 = ssub.s32 512, 512
      %28 = vsyncadd [#allocation6], %s27
      %s30 = sshll.u32 [#allocation5], 4
      %s31 = int_to_ptr.vmem [resolvable:$true] %s30
      %33 = dma.hbm_to_vmem [thread:$0]  %s1, 512, %s31, [#allocation6]
    $region9: #{tpu_custom_call.1} parent=1 // pred_fallthru
      _
    // Predicated region
    $region10: #{tpu_custom_call.1} parent=1 // pred_check
      _
    $region11: #{tpu_custom_call.1} parent=1 // pred_check_branch
      %35 = sbr.rel (0) target = $region13
    $region12: #{tpu_custom_call.1} parent=1 // pred_region
      %s37 = ssub.s32 8192, 8192
      %38 = vsyncadd [#allocation6], %s37
      %s39 = sshll.u32 [#allocation7], 4
      %s40 = int_to_ptr.vmem [resolvable:$true] %s39
      %45 = dma.hbm_to_vmem [thread:$0]  %s2, 8192, %s40, [#allocation6], 128, 128, 8
    $region13: #{tpu_custom_call.1} parent=1 // pred_fallthru
      _
    // Predicated region
    $region14: #{tpu_custom_call.1} parent=1 // pred_check
      _
    $region15: #{tpu_custom_call.1} parent=1 // pred_check_branch
      %47 = sbr.rel (0) target = $region17
    $region16: #{tpu_custom_call.1} parent=1 // pred_region
      %s49 = ssub.s32 8192, 8192
      %50 = vsyncadd [#allocation9], %s49
      %s51 = sshll.u32 [#allocation8], 4
      %s52 = int_to_ptr.vmem [resolvable:$true] %s51
      %57 = dma.hbm_to_vmem [thread:$0]  %s3, 8192, %s52, [#allocation9], 128, 128, 8
    $region17: #{tpu_custom_call.1} parent=1 // pred_fallthru
      _
    // Predicated region
    $region18: #{tpu_custom_call.1} parent=1 // pred_check
      _
    $region19: #{tpu_custom_call.1} parent=1 // pred_check_branch
      %59 = sbr.rel (0) target = $region21
    $region20: #{tpu_custom_call.1} parent=1 // pred_region
      _
    $region21: #{tpu_custom_call.1} parent=1 // pred_fallthru
      _
    // Predicated region
    $region22: #{tpu_custom_call.1} parent=1 // pred_check
      _
    $region23: #{tpu_custom_call.1} parent=1 // pred_check_branch
      %61 = sbr.rel (0) target = $region25
    $region24: #{tpu_custom_call.1} parent=1 // pred_region
      %62 = dma.done [#allocation3], 512
    $region25: #{tpu_custom_call.1} parent=1 // pred_fallthru
      _
    // Predicated region
    $region26: #{tpu_custom_call.1} parent=1 // pred_check
      _
    $region27: #{tpu_custom_call.1} parent=1 // pred_check_branch
      %64 = sbr.rel (0) target = $region29
    $region28: #{tpu_custom_call.1} parent=1 // pred_region
      %65 = dma.done [#allocation6], 512
    $region29: #{tpu_custom_call.1} parent=1 // pred_fallthru
      _
    // Predicated region
    $region30: #{tpu_custom_call.1} parent=1 // pred_check
      _
    $region31: #{tpu_custom_call.1} parent=1 // pred_check_branch
      %67 = sbr.rel (0) target = $region33
    $region32: #{tpu_custom_call.1} parent=1 // pred_region
      %68 = dma.done [#allocation6], 8192
    $region33: #{tpu_custom_call.1} parent=1 // pred_fallthru
      _
    // Predicated region
    $region34: #{tpu_custom_call.1} parent=1 // pred_check
      _
    $region35: #{tpu_custom_call.1} parent=1 // pred_check_branch
      %70 = sbr.rel (0) target = $region37
    $region36: #{tpu_custom_call.1} parent=1 // pred_region
      %71 = dma.done [#allocation9], 8192
    $region37: #{tpu_custom_call.1} parent=1 // pred_fallthru
      _
    %v72 = vld [vmem:[#allocation2] sm:$0xff]
    %v73 = vld [vmem:[#allocation2 + $0x8] sm:$0xff]
    %v74 = vld [vmem:[#allocation2 + $0x10] sm:$0xff]
    %v75 = vld [vmem:[#allocation2 + $0x18] sm:$0xff]
    %v76 = vld [vmem:[#allocation7] sm:$0xff]
    %v77 = vld [vmem:[#allocation7 + $0x8] sm:$0xff]
    %v78 = vld [vmem:[#allocation7 + $0x10] sm:$0xff]
    %v79 = vld [vmem:[#allocation7 + $0x18] sm:$0xff]
    %v80 = vld [vmem:[#allocation7 + $0x20] sm:$0xff]
    %v81 = vld [vmem:[#allocation7 + $0x28] sm:$0xff]
    %v82 = vld [vmem:[#allocation7 + $0x30] sm:$0xff]
    %v83 = vld [vmem:[#allocation7 + $0x38] sm:$0xff]
    %v84 = vld [vmem:[#allocation7 + $0x40] sm:$0xff]
    %v85 = vld [vmem:[#allocation7 + $0x48] sm:$0xff]
    %v86 = vld [vmem:[#allocation7 + $0x50] sm:$0xff]
    %v87 = vld [vmem:[#allocation7 + $0x58] sm:$0xff]
    %v88 = vld [vmem:[#allocation7 + $0x60] sm:$0xff]
    %v89 = vld [vmem:[#allocation7 + $0x68] sm:$0xff]
    %v90 = vld [vmem:[#allocation7 + $0x70] sm:$0xff]
    %v91 = vld [vmem:[#allocation7 + $0x78] sm:$0xff]
    %v92 = vld [vmem:[#allocation7 + $0x80] sm:$0xff]
    %v93 = vld [vmem:[#allocation7 + $0x88] sm:$0xff]
    %v94 = vld [vmem:[#allocation7 + $0x90] sm:$0xff]
    %v95 = vld [vmem:[#allocation7 + $0x98] sm:$0xff]
    %v96 = vld [vmem:[#allocation7 + $0xa0] sm:$0xff]
    %v97 = vld [vmem:[#allocation7 + $0xa8] sm:$0xff]
    %v98 = vld [vmem:[#allocation7 + $0xb0] sm:$0xff]
    %v99 = vld [vmem:[#allocation7 + $0xb8] sm:$0xff]
    %v100 = vld [vmem:[#allocation7 + $0xc0] sm:$0xff]
    %v101 = vld [vmem:[#allocation7 + $0xc8] sm:$0xff]
    %v102 = vld [vmem:[#allocation7 + $0xd0] sm:$0xff]
    %v103 = vld [vmem:[#allocation7 + $0xd8] sm:$0xff]
    %v104 = vld [vmem:[#allocation7 + $0xe0] sm:$0xff]
    %v105 = vld [vmem:[#allocation7 + $0xe8] sm:$0xff]
    %v106 = vld [vmem:[#allocation7 + $0xf0] sm:$0xff]
    %v107 = vld [vmem:[#allocation7 + $0xf8] sm:$0xff]
    %v108 = vld [vmem:[#allocation7 + $0x100] sm:$0xff]
    %v109 = vld [vmem:[#allocation7 + $0x108] sm:$0xff]
    %v110 = vld [vmem:[#allocation7 + $0x110] sm:$0xff]
    %v111 = vld [vmem:[#allocation7 + $0x118] sm:$0xff]
    %v112 = vld [vmem:[#allocation7 + $0x120] sm:$0xff]
    %v113 = vld [vmem:[#allocation7 + $0x128] sm:$0xff]
    %v114 = vld [vmem:[#allocation7 + $0x130] sm:$0xff]
    %v115 = vld [vmem:[#allocation7 + $0x138] sm:$0xff]
    %v116 = vld [vmem:[#allocation7 + $0x140] sm:$0xff]
    %v117 = vld [vmem:[#allocation7 + $0x148] sm:$0xff]
    %v118 = vld [vmem:[#allocation7 + $0x150] sm:$0xff]
    %v119 = vld [vmem:[#allocation7 + $0x158] sm:$0xff]
    %v120 = vld [vmem:[#allocation7 + $0x160] sm:$0xff]
    %v121 = vld [vmem:[#allocation7 + $0x168] sm:$0xff]
    %v122 = vld [vmem:[#allocation7 + $0x170] sm:$0xff]
    %v123 = vld [vmem:[#allocation7 + $0x178] sm:$0xff]
    %v124 = vld [vmem:[#allocation7 + $0x180] sm:$0xff]
    %v125 = vld [vmem:[#allocation7 + $0x188] sm:$0xff]
    %v126 = vld [vmem:[#allocation7 + $0x190] sm:$0xff]
    %v127 = vld [vmem:[#allocation7 + $0x198] sm:$0xff]
    %v128 = vld [vmem:[#allocation7 + $0x1a0] sm:$0xff]
    %v129 = vld [vmem:[#allocation7 + $0x1a8] sm:$0xff]
    %v130 = vld [vmem:[#allocation7 + $0x1b0] sm:$0xff]
    %v131 = vld [vmem:[#allocation7 + $0x1b8] sm:$0xff]
    %v132 = vld [vmem:[#allocation7 + $0x1c0] sm:$0xff]
    %v133 = vld [vmem:[#allocation7 + $0x1c8] sm:$0xff]
    %v134 = vld [vmem:[#allocation7 + $0x1d0] sm:$0xff]
    %v135 = vld [vmem:[#allocation7 + $0x1d8] sm:$0xff]
    %v136 = vld [vmem:[#allocation7 + $0x1e0] sm:$0xff]
    %v137 = vld [vmem:[#allocation7 + $0x1e8] sm:$0xff]
    %v138 = vld [vmem:[#allocation7 + $0x1f0] sm:$0xff]
    %v139 = vld [vmem:[#allocation7 + $0x1f8] sm:$0xff]
    %v140 = vld [vmem:[#allocation5] sm:$0xff]
    %v141 = vld [vmem:[#allocation5 + $0x8] sm:$0xff]
    %v142 = vld [vmem:[#allocation5 + $0x10] sm:$0xff]
    %v143 = vld [vmem:[#allocation5 + $0x18] sm:$0xff]
    %v144 = vld [vmem:[#allocation8] sm:$0xff]
    %v145 = vld [vmem:[#allocation8 + $0x8] sm:$0xff]
    %v146 = vld [vmem:[#allocation8 + $0x10] sm:$0xff]
    %v147 = vld [vmem:[#allocation8 + $0x18] sm:$0xff]
    %v148 = vld [vmem:[#allocation8 + $0x20] sm:$0xff]
    %v149 = vld [vmem:[#allocation8 + $0x28] sm:$0xff]
    %v150 = vld [vmem:[#allocation8 + $0x30] sm:$0xff]
    %v151 = vld [vmem:[#allocation8 + $0x38] sm:$0xff]
    %v152 = vld [vmem:[#allocation8 + $0x40] sm:$0xff]
    %v153 = vld [vmem:[#allocation8 + $0x48] sm:$0xff]
    %v154 = vld [vmem:[#allocation8 + $0x50] sm:$0xff]
    %v155 = vld [vmem:[#allocation8 + $0x58] sm:$0xff]
    %v156 = vld [vmem:[#allocation8 + $0x60] sm:$0xff]
    %v157 = vld [vmem:[#allocation8 + $0x68] sm:$0xff]
    %v158 = vld [vmem:[#allocation8 + $0x70] sm:$0xff]
    %v159 = vld [vmem:[#allocation8 + $0x78] sm:$0xff]
    %v160 = vld [vmem:[#allocation8 + $0x80] sm:$0xff]
    %v161 = vld [vmem:[#allocation8 + $0x88] sm:$0xff]
    %v162 = vld [vmem:[#allocation8 + $0x90] sm:$0xff]
    %v163 = vld [vmem:[#allocation8 + $0x98] sm:$0xff]
    %v164 = vld [vmem:[#allocation8 + $0xa0] sm:$0xff]
    %v165 = vld [vmem:[#allocation8 + $0xa8] sm:$0xff]
    %v166 = vld [vmem:[#allocation8 + $0xb0] sm:$0xff]
    %v167 = vld [vmem:[#allocation8 + $0xb8] sm:$0xff]
    %v168 = vld [vmem:[#allocation8 + $0xc0] sm:$0xff]
    %v169 = vld [vmem:[#allocation8 + $0xc8] sm:$0xff]
    %v170 = vld [vmem:[#allocation8 + $0xd0] sm:$0xff]
    %v171 = vld [vmem:[#allocation8 + $0xd8] sm:$0xff]
    %v172 = vld [vmem:[#allocation8 + $0xe0] sm:$0xff]
    %v173 = vld [vmem:[#allocation8 + $0xe8] sm:$0xff]
    %v174 = vld [vmem:[#allocation8 + $0xf0] sm:$0xff]
    %v175 = vld [vmem:[#allocation8 + $0xf8] sm:$0xff]
    %v176 = vld [vmem:[#allocation8 + $0x100] sm:$0xff]
    %v177 = vld [vmem:[#allocation8 + $0x108] sm:$0xff]
    %v178 = vld [vmem:[#allocation8 + $0x110] sm:$0xff]
    %v179 = vld [vmem:[#allocation8 + $0x118] sm:$0xff]
    %v180 = vld [vmem:[#allocation8 + $0x120] sm:$0xff]
    %v181 = vld [vmem:[#allocation8 + $0x128] sm:$0xff]
    %v182 = vld [vmem:[#allocation8 + $0x130] sm:$0xff]
    %v183 = vld [vmem:[#allocation8 + $0x138] sm:$0xff]
    %v184 = vld [vmem:[#allocation8 + $0x140] sm:$0xff]
    %v185 = vld [vmem:[#allocation8 + $0x148] sm:$0xff]
    %v186 = vld [vmem:[#allocation8 + $0x150] sm:$0xff]
    %v187 = vld [vmem:[#allocation8 + $0x158] sm:$0xff]
    %v188 = vld [vmem:[#allocation8 + $0x160] sm:$0xff]
    %v189 = vld [vmem:[#allocation8 + $0x168] sm:$0xff]
    %v190 = vld [vmem:[#allocation8 + $0x170] sm:$0xff]
    %v191 = vld [vmem:[#allocation8 + $0x178] sm:$0xff]
    %v192 = vld [vmem:[#allocation8 + $0x180] sm:$0xff]
    %v193 = vld [vmem:[#allocation8 + $0x188] sm:$0xff]
    %v194 = vld [vmem:[#allocation8 + $0x190] sm:$0xff]
    %v195 = vld [vmem:[#allocation8 + $0x198] sm:$0xff]
    %v196 = vld [vmem:[#allocation8 + $0x1a0] sm:$0xff]
    %v197 = vld [vmem:[#allocation8 + $0x1a8] sm:$0xff]
    %v198 = vld [vmem:[#allocation8 + $0x1b0] sm:$0xff]
    %v199 = vld [vmem:[#allocation8 + $0x1b8] sm:$0xff]
    %v200 = vld [vmem:[#allocation8 + $0x1c0] sm:$0xff]
    %v201 = vld [vmem:[#allocation8 + $0x1c8] sm:$0xff]
    %v202 = vld [vmem:[#allocation8 + $0x1d0] sm:$0xff]
    %v203 = vld [vmem:[#allocation8 + $0x1d8] sm:$0xff]
    %v204 = vld [vmem:[#allocation8 + $0x1e0] sm:$0xff]
    %v205 = vld [vmem:[#allocation8 + $0x1e8] sm:$0xff]
    %v206 = vld [vmem:[#allocation8 + $0x1f0] sm:$0xff]
    %v207 = vld [vmem:[#allocation8 + $0x1f8] sm:$0xff]
    %208 = vmatprep.subr.mxu0 0.0
    %209 = vmatpush1.msra.mxu0 %v144
    %210 = vmatprep.subr.mxu0 0.0
    %211 = vmatpush1.msra.mxu0 %v145
    %212 = vmatprep.subr.mxu0 0.0
    %213 = vmatpush1.msra.mxu0 %v146
    %214 = vmatprep.subr.mxu0 0.0
    %215 = vmatpush1.msra.mxu0 %v147
    %216 = vmatprep.subr.mxu0 0.0
    %217 = vmatpush1.msra.mxu0 %v148
    %218 = vmatprep.subr.mxu0 0.0
    %219 = vmatpush1.msra.mxu0 %v149
    %220 = vmatprep.subr.mxu0 0.0
    %221 = vmatpush1.msra.mxu0 %v150
    %222 = vmatprep.subr.mxu0 0.0
    %223 = vmatpush1.msra.mxu0 %v151
    %224 = vmatprep.subr.mxu0 0.0
    %225 = vmatpush1.msra.mxu0 %v152
    %226 = vmatprep.subr.mxu0 0.0
    %227 = vmatpush1.msra.mxu0 %v153
    %228 = vmatprep.subr.mxu0 0.0
    %229 = vmatpush1.msra.mxu0 %v154
    %230 = vmatprep.subr.mxu0 0.0
    %231 = vmatpush1.msra.mxu0 %v155
    %232 = vmatprep.subr.mxu0 0.0
    %233 = vmatpush1.msra.mxu0 %v156
    %234 = vmatprep.subr.mxu0 0.0
    %235 = vmatpush1.msra.mxu0 %v157
    %236 = vmatprep.subr.mxu0 0.0
    %237 = vmatpush1.msra.mxu0 %v158
    %238 = vmatprep.subr.mxu0 0.0
    %239 = vmatpush1.msra.mxu0 %v159
    %240 = vmatprep.subr.mxu0 0.0
    %241 = vmatpush1.msra.mxu0 %v160
    %242 = vmatprep.subr.mxu0 0.0
    %243 = vmatpush1.msra.mxu0 %v161
    %244 = vmatprep.subr.mxu0 0.0
    %245 = vmatpush1.msra.mxu0 %v162
    %246 = vmatprep.subr.mxu0 0.0
    %247 = vmatpush1.msra.mxu0 %v163
    %248 = vmatprep.subr.mxu0 0.0
    %249 = vmatpush1.msra.mxu0 %v164
    %250 = vmatprep.subr.mxu0 0.0
    %251 = vmatpush1.msra.mxu0 %v165
    %252 = vmatprep.subr.mxu0 0.0
    %253 = vmatpush1.msra.mxu0 %v166
    %254 = vmatprep.subr.mxu0 0.0
    %255 = vmatpush1.msra.mxu0 %v167
    %256 = vmatprep.subr.mxu0 0.0
    %257 = vmatpush1.msra.mxu0 %v168
    %258 = vmatprep.subr.mxu0 0.0
    %259 = vmatpush1.msra.mxu0 %v169
    %260 = vmatprep.subr.mxu0 0.0
    %261 = vmatpush1.msra.mxu0 %v170
    %262 = vmatprep.subr.mxu0 0.0
    %263 = vmatpush1.msra.mxu0 %v171
    %264 = vmatprep.subr.mxu0 0.0
    %265 = vmatpush1.msra.mxu0 %v172
    %266 = vmatprep.subr.mxu0 0.0
    %267 = vmatpush1.msra.mxu0 %v173
    %268 = vmatprep.subr.mxu0 0.0
    %269 = vmatpush1.msra.mxu0 %v174
    %270 = vmatprep.subr.mxu0 0.0
    %271 = vmatpush1.msra.mxu0 %v175
    %272 = vmatprep.mubr.f32.mxu0 %v141
    %273 = vmatmul.mubr.f32.gmra.mrb[0].mxu0 %v140
    %v274 = vpop.f32.mrb[0].mxu0
    %v275 = vadd.f32 0.0, %v274
    %v276 = vpop.f32.mrb[0].mxu0
    %277 = vdwg.mxu0
    %278 = vmatprep.subr.mxu0 0.0
    %279 = vmatpush1.msra.mxu0 %v176
    %280 = vmatprep.subr.mxu0 0.0
    %281 = vmatpush1.msra.mxu0 %v177
    %282 = vmatprep.subr.mxu0 0.0
    %283 = vmatpush1.msra.mxu0 %v178
    %284 = vmatprep.subr.mxu0 0.0
    %285 = vmatpush1.msra.mxu0 %v179
    %286 = vmatprep.subr.mxu0 0.0
    %287 = vmatpush1.msra.mxu0 %v180
    %288 = vmatprep.subr.mxu0 0.0
    %289 = vmatpush1.msra.mxu0 %v181
    %290 = vmatprep.subr.mxu0 0.0
    %291 = vmatpush1.msra.mxu0 %v182
    %292 = vmatprep.subr.mxu0 0.0
    %293 = vmatpush1.msra.mxu0 %v183
    %294 = vmatprep.subr.mxu0 0.0
    %295 = vmatpush1.msra.mxu0 %v184
    %296 = vmatprep.subr.mxu0 0.0
    %297 = vmatpush1.msra.mxu0 %v185
    %298 = vmatprep.subr.mxu0 0.0
    %299 = vmatpush1.msra.mxu0 %v186
    %300 = vmatprep.subr.mxu0 0.0
    %301 = vmatpush1.msra.mxu0 %v187
    %302 = vmatprep.subr.mxu0 0.0
    %303 = vmatpush1.msra.mxu0 %v188
    %304 = vmatprep.subr.mxu0 0.0
    %305 = vmatpush1.msra.mxu0 %v189
    %306 = vmatprep.subr.mxu0 0.0
    %307 = vmatpush1.msra.mxu0 %v190
    %308 = vmatprep.subr.mxu0 0.0
    %309 = vmatpush1.msra.mxu0 %v191
    %310 = vmatprep.subr.mxu0 0.0
    %311 = vmatpush1.msra.mxu0 %v192
    %312 = vmatprep.subr.mxu0 0.0
    %313 = vmatpush1.msra.mxu0 %v193
    %314 = vmatprep.subr.mxu0 0.0
    %315 = vmatpush1.msra.mxu0 %v194
    %316 = vmatprep.subr.mxu0 0.0
    %317 = vmatpush1.msra.mxu0 %v195
    %318 = vmatprep.subr.mxu0 0.0
    %319 = vmatpush1.msra.mxu0 %v196
    %320 = vmatprep.subr.mxu0 0.0
    %321 = vmatpush1.msra.mxu0 %v197
    %322 = vmatprep.subr.mxu0 0.0
    %323 = vmatpush1.msra.mxu0 %v198
    %324 = vmatprep.subr.mxu0 0.0
    %325 = vmatpush1.msra.mxu0 %v199
    %326 = vmatprep.subr.mxu0 0.0
    %327 = vmatpush1.msra.mxu0 %v200
    %328 = vmatprep.subr.mxu0 0.0
    %329 = vmatpush1.msra.mxu0 %v201
    %330 = vmatprep.subr.mxu0 0.0
    %331 = vmatpush1.msra.mxu0 %v202
    %332 = vmatprep.subr.mxu0 0.0
    %333 = vmatpush1.msra.mxu0 %v203
    %334 = vmatprep.subr.mxu0 0.0
    %335 = vmatpush1.msra.mxu0 %v204
    %336 = vmatprep.subr.mxu0 0.0
    %337 = vmatpush1.msra.mxu0 %v205
    %338 = vmatprep.subr.mxu0 0.0
    %339 = vmatpush1.msra.mxu0 %v206
    %340 = vmatprep.subr.mxu0 0.0
    %341 = vmatpush1.msra.mxu0 %v207
    %342 = vmatprep.mubr.f32.mxu0 %v143
    %343 = vmatmul.mubr.f32.gmra.mrb[0].mxu0 %v142
    %v344 = vpop.f32.mrb[0].mxu0
    %v345 = vadd.f32 %v275, %v344
    %v346 = vpop.f32.mrb[0].mxu0
    %347 = vdwg.mxu0
    %348 = vmatprep.subr.mxu0 0.0
    %349 = vmatpush1.msra.mxu0 %v76
    %350 = vmatprep.subr.mxu0 0.0
    %351 = vmatpush1.msra.mxu0 %v77
    %352 = vmatprep.subr.mxu0 0.0
    %353 = vmatpush1.msra.mxu0 %v78
    %354 = vmatprep.subr.mxu0 0.0
    %355 = vmatpush1.msra.mxu0 %v79
    %356 = vmatprep.subr.mxu0 0.0
    %357 = vmatpush1.msra.mxu0 %v80
    %358 = vmatprep.subr.mxu0 0.0
    %359 = vmatpush1.msra.mxu0 %v81
    %360 = vmatprep.subr.mxu0 0.0
    %361 = vmatpush1.msra.mxu0 %v82
    %362 = vmatprep.subr.mxu0 0.0
    %363 = vmatpush1.msra.mxu0 %v83
    %364 = vmatprep.subr.mxu0 0.0
    %365 = vmatpush1.msra.mxu0 %v84
    %366 = vmatprep.subr.mxu0 0.0
    %367 = vmatpush1.msra.mxu0 %v85
    %368 = vmatprep.subr.mxu0 0.0
    %369 = vmatpush1.msra.mxu0 %v86
    %370 = vmatprep.subr.mxu0 0.0
    %371 = vmatpush1.msra.mxu0 %v87
    %372 = vmatprep.subr.mxu0 0.0
    %373 = vmatpush1.msra.mxu0 %v88
    %374 = vmatprep.subr.mxu0 0.0
    %375 = vmatpush1.msra.mxu0 %v89
    %376 = vmatprep.subr.mxu0 0.0
    %377 = vmatpush1.msra.mxu0 %v90
    %378 = vmatprep.subr.mxu0 0.0
    %379 = vmatpush1.msra.mxu0 %v91
    %380 = vmatprep.subr.mxu0 0.0
    %381 = vmatpush1.msra.mxu0 %v92
    %382 = vmatprep.subr.mxu0 0.0
    %383 = vmatpush1.msra.mxu0 %v93
    %384 = vmatprep.subr.mxu0 0.0
    %385 = vmatpush1.msra.mxu0 %v94
    %386 = vmatprep.subr.mxu0 0.0
    %387 = vmatpush1.msra.mxu0 %v95
    %388 = vmatprep.subr.mxu0 0.0
    %389 = vmatpush1.msra.mxu0 %v96
    %390 = vmatprep.subr.mxu0 0.0
    %391 = vmatpush1.msra.mxu0 %v97
    %392 = vmatprep.subr.mxu0 0.0
    %393 = vmatpush1.msra.mxu0 %v98
    %394 = vmatprep.subr.mxu0 0.0
    %395 = vmatpush1.msra.mxu0 %v99
    %396 = vmatprep.subr.mxu0 0.0
    %397 = vmatpush1.msra.mxu0 %v100
    %398 = vmatprep.subr.mxu0 0.0
    %399 = vmatpush1.msra.mxu0 %v101
    %400 = vmatprep.subr.mxu0 0.0
    %401 = vmatpush1.msra.mxu0 %v102
    %402 = vmatprep.subr.mxu0 0.0
    %403 = vmatpush1.msra.mxu0 %v103
    %404 = vmatprep.subr.mxu0 0.0
    %405 = vmatpush1.msra.mxu0 %v104
    %406 = vmatprep.subr.mxu0 0.0
    %407 = vmatpush1.msra.mxu0 %v105
    %408 = vmatprep.subr.mxu0 0.0
    %409 = vmatpush1.msra.mxu0 %v106
    %410 = vmatprep.subr.mxu0 0.0
    %411 = vmatpush1.msra.mxu0 %v107
    %412 = vmatprep.mubr.f32.mxu0 %v73
    %413 = vmatmul.mubr.f32.gmra.mrb[0].mxu0 %v72
    %v414 = vpop.f32.mrb[0].mxu0
    %v415 = vadd.f32 %v345, %v414
    %v416 = vpop.f32.mrb[0].mxu0
    %417 = vdwg.mxu0
    %418 = vmatprep.subr.mxu0 0.0
    %419 = vmatpush1.msra.mxu0 %v108
    %420 = vmatprep.subr.mxu0 0.0
    %421 = vmatpush1.msra.mxu0 %v109
    %422 = vmatprep.subr.mxu0 0.0
    %423 = vmatpush1.msra.mxu0 %v110
    %424 = vmatprep.subr.mxu0 0.0
    %425 = vmatpush1.msra.mxu0 %v111
    %426 = vmatprep.subr.mxu0 0.0
    %427 = vmatpush1.msra.mxu0 %v112
    %428 = vmatprep.subr.mxu0 0.0
    %429 = vmatpush1.msra.mxu0 %v113
    %430 = vmatprep.subr.mxu0 0.0
    %431 = vmatpush1.msra.mxu0 %v114
    %432 = vmatprep.subr.mxu0 0.0
    %433 = vmatpush1.msra.mxu0 %v115
    %434 = vmatprep.subr.mxu0 0.0
    %435 = vmatpush1.msra.mxu0 %v116
    %436 = vmatprep.subr.mxu0 0.0
    %437 = vmatpush1.msra.mxu0 %v117
    %438 = vmatprep.subr.mxu0 0.0
    %439 = vmatpush1.msra.mxu0 %v118
    %440 = vmatprep.subr.mxu0 0.0
    %441 = vmatpush1.msra.mxu0 %v119
    %442 = vmatprep.subr.mxu0 0.0
    %443 = vmatpush1.msra.mxu0 %v120
    %444 = vmatprep.subr.mxu0 0.0
    %445 = vmatpush1.msra.mxu0 %v121
    %446 = vmatprep.subr.mxu0 0.0
    %447 = vmatpush1.msra.mxu0 %v122
    %448 = vmatprep.subr.mxu0 0.0
    %449 = vmatpush1.msra.mxu0 %v123
    %450 = vmatprep.subr.mxu0 0.0
    %451 = vmatpush1.msra.mxu0 %v124
    %452 = vmatprep.subr.mxu0 0.0
    %453 = vmatpush1.msra.mxu0 %v125
    %454 = vmatprep.subr.mxu0 0.0
    %455 = vmatpush1.msra.mxu0 %v126
    %456 = vmatprep.subr.mxu0 0.0
    %457 = vmatpush1.msra.mxu0 %v127
    %458 = vmatprep.subr.mxu0 0.0
    %459 = vmatpush1.msra.mxu0 %v128
    %460 = vmatprep.subr.mxu0 0.0
    %461 = vmatpush1.msra.mxu0 %v129
    %462 = vmatprep.subr.mxu0 0.0
    %463 = vmatpush1.msra.mxu0 %v130
    %464 = vmatprep.subr.mxu0 0.0
    %465 = vmatpush1.msra.mxu0 %v131
    %466 = vmatprep.subr.mxu0 0.0
    %467 = vmatpush1.msra.mxu0 %v132
    %468 = vmatprep.subr.mxu0 0.0
    %469 = vmatpush1.msra.mxu0 %v133
    %470 = vmatprep.subr.mxu0 0.0
    %471 = vmatpush1.msra.mxu0 %v134
    %472 = vmatprep.subr.mxu0 0.0
    %473 = vmatpush1.msra.mxu0 %v135
    %474 = vmatprep.subr.mxu0 0.0
    %475 = vmatpush1.msra.mxu0 %v136
    %476 = vmatprep.subr.mxu0 0.0
    %477 = vmatpush1.msra.mxu0 %v137
    %478 = vmatprep.subr.mxu0 0.0
    %479 = vmatpush1.msra.mxu0 %v138
    %480 = vmatprep.subr.mxu0 0.0
    %481 = vmatpush1.msra.mxu0 %v139
    %482 = vmatprep.mubr.f32.mxu0 %v75
    %483 = vmatmul.mubr.f32.gmra.mrb[0].mxu0 %v74
    %v484 = vpop.f32.mrb[0].mxu0
    %v485 = vadd.f32 %v415, %v484
    %v486 = vpop.f32.mrb[0].mxu0
    %487 = vdwg.mxu0
    %v488 = vld [vmem:[%s4] sm:$0x1]
    %v490 = vlaneseq
    %v491 = vshrl.u32 %v490, 7
    %v492 = vsub.s32 0, %v491
    %v493 = vrot.slane %v488, %v492
    %v495 = vadd.f32 %v485, %v493
    %496 = vst [vmem:[#allocation10] sm:$0xff] %v495
    // Predicated region
    $region38: #{tpu_custom_call.1} parent=1 // pred_check
      _
    $region39: #{tpu_custom_call.1} parent=1 // pred_check_branch
      %498 = sbr.rel (0) target = $region41
    $region40: #{tpu_custom_call.1} parent=1 // pred_region
      %s500 = ssub.s32 128, 128
      %501 = vsyncadd [#allocation4], %s500
      %s503 = sshll.u32 [#allocation10], 4
      %s504 = int_to_ptr.vmem [resolvable:$true] %s503
      %506 = dma.vmem_to_hbm [thread:$0]  %s504, 128, %s5, [#allocation4]
    $region41: #{tpu_custom_call.1} parent=1 // pred_fallthru
      _
    // Predicated region
    $region42: #{tpu_custom_call.1} parent=1 // pred_check
      _
    $region43: #{tpu_custom_call.1} parent=1 // pred_check_branch
      %508 = sbr.rel (0) target = $region45
    $region44: #{tpu_custom_call.1} parent=1 // pred_region
      %509 = dma.done [#allocation4], 128
    $region45: #{tpu_custom_call.1} parent=1 // pred_fallthru
      _
    %510 = vsyncpa [#allocation3], 1
    %511 = vsyncpa [#allocation6], 1
    %512 = vsyncpa [#allocation9], 1
    %513 = vsyncpa [#allocation4], 1

</llo_original>
